<compile_context>
chip_gen: v7x
topology: tpu7x:2x2x1
jax: 0.10.0
libtpu: 0.0.40
codegen_flags: <defaults>
</compile_context>

<pallas_src>
import math
import functools
from typing import Sequence, Union

import jax
import jax.numpy as jnp
from jax import lax
from jax.experimental import pallas as pl
from jax.experimental.pallas import tpu as pltpu


# ---------------------------------------------------------------------------
# Generation-aware sizing helpers.
# ---------------------------------------------------------------------------
def _vmem_limit_bytes() -> int:
    """Explicit scoped-VMEM limit: ~half of physical VMEM, clamped to [16, 64] MiB."""
    try:
        cap = int(pltpu.get_tpu_info().vmem_capacity_bytes)
    except Exception:  # CPU interpret / older runtimes
        cap = 64 << 20
    return int(max(16 << 20, min(cap // 2, 64 << 20)))


def _target_block_bytes() -> int:
    # in + out are double-buffered (4 block-sized VMEM buffers); keep 2x headroom.
    return int(min(8 << 20, max(1 << 20, _vmem_limit_bytes() // 8)))


def _plan_blocks(n_rows: int, n_cols: int, col_bytes: int, target_bytes: int,
                 col_align: int):
    """Pick (rows_per_block, cols_per_block) with block ~= target_bytes.

    rows_per_block is a multiple of 8 (or == n_rows) and capped so the grid keeps
    >= 2 steps over rows (v7x megacore); cols_per_block is a multiple of col_align
    (or == n_cols).  Tails are handled by pl.cdiv grids (Pallas clips them)."""
    row_bytes = max(1, n_cols * col_bytes)
    bb = target_bytes // row_bytes
    if n_rows >= 2:
        bb = min(bb, (n_rows + 1) // 2)
    if bb >= n_rows:
        bb = n_rows
    elif bb >= 8:
        bb = (bb // 8) * 8
    else:
        bb = min(n_rows, 8)
    tc = target_bytes // max(1, bb * col_bytes)
    if tc < n_cols:
        tc = max(col_align, (tc // col_align) * col_align)
    if tc >= n_cols:
        tc = n_cols
    return int(bb), int(tc)


# ---------------------------------------------------------------------------
# Pallas kernel: masked fill along the LAST axis of a tile, vectorized over rows.
#   start_ref / len_ref : VMEM (bb, num_mask) int32 (band start / length, in elements
#                         of the tile's last axis).
#   spec_ref / out_ref  : VMEM (bb, D_blk) or (bb, T_blk, F).
#   Optional fill_ref   : SMEM (1,) float32 (mean-fill mode only).
# ---------------------------------------------------------------------------
def _mask_fill_kernel(start_ref, len_ref, *rest, num_mask: int, has_fill_ref: bool,
                      fill_const: float, col_tiles_masked_axis: bool):
    if has_fill_ref:
        fill_ref, spec_ref, out_ref = rest
    else:
        spec_ref, out_ref = rest

    x = spec_ref[...]
    if num_mask == 0:
        out_ref[...] = x
        return

    if has_fill_ref:
        fill = fill_ref[0].astype(x.dtype)
    else:
        fill = jnp.array(fill_const, dtype=x.dtype)

    ndim = x.ndim
    d_blk = x.shape[-1]
    idx = lax.broadcasted_iota(jnp.int32, (1,) * (ndim - 1) + (d_blk,), ndim - 1)
    if col_tiles_masked_axis:
        # Second grid axis tiles the masked (last) axis -> add the global offset.
        idx = idx + pl.program_id(1) * d_blk

    starts = start_ref[...]                    # (bb, num_mask) int32
    lens = len_ref[...]
    bb = starts.shape[0]
    col_shape = (bb,) + (1,) * (ndim - 1)

    mask = None
    for m in range(num_mask):                  # num_mask is small & static
        s = starts[:, m:m + 1].reshape(col_shape)
        e = s + lens[:, m:m + 1].reshape(col_shape)
        band = (s <= idx) & (idx < e)          # (bb, ..., D_blk) via broadcast
        mask = band if mask is None else (mask | band)

    out_ref[...] = jnp.where(mask, fill, x)


def _mask_fill_pallas(spec, mask_pos, mask_length, dim, num_mask,
                      fill_const=None, fill_scalar=None):
    """spec: (B, T, F); mask_pos/mask_length: (B, num_mask) int32.

    Exactly one of fill_const (python float, static) or fill_scalar ((1,) f32 array)
    must be given."""
    if num_mask <= 0:
        return spec
    B, T, F = spec.shape
    itemsize = spec.dtype.itemsize
    target = _target_block_bytes()
    has_fill_ref = fill_scalar is not None

    if dim == 1:
        # Lane-dense time masking: flatten (T, F) -> T*F so the band is a contiguous
        # lane range and output stores are wide & unmasked.
        D = T * F
        x = spec.reshape(B, D)
        starts = (mask_pos * F).astype(jnp.int32)
        lengths = (mask_length * F).astype(jnp.int32)
        bb, tc = _plan_blocks(B, D, itemsize, target, col_align=128)
        grid = (pl.cdiv(B, bb), pl.cdiv(D, tc))
        spec_spec = pl.BlockSpec((bb, tc), lambda g, c: (g, c))
        out_spec = pl.BlockSpec((bb, tc), lambda g, c: (g, c))
        out_shape = jax.ShapeDtypeStruct((B, D), spec.dtype)
        col_tiles_masked_axis = True
    else:
        # Freq masking: keep (B, T, F) blocks; the masked (last) axis is full-F.
        x = spec
        starts = mask_pos.astype(jnp.int32)
        lengths = mask_length.astype(jnp.int32)
        bb, tt = _plan_blocks(B, T, F * itemsize, target, col_align=8)
        grid = (pl.cdiv(B, bb), pl.cdiv(T, tt))
        spec_spec = pl.BlockSpec((bb, tt, F), lambda g, c: (g, c, 0))
        out_spec = pl.BlockSpec((bb, tt, F), lambda g, c: (g, c, 0))
        out_shape = jax.ShapeDtypeStruct((B, T, F), spec.dtype)
        col_tiles_masked_axis = False

    tbl_spec = pl.BlockSpec((bb, num_mask), lambda g, c: (g, 0))
    in_specs = [tbl_spec, tbl_spec]
    args = [starts, lengths]
    if has_fill_ref:
        in_specs.append(pl.BlockSpec(memory_space=pltpu.MemorySpace.SMEM))
        args.append(fill_scalar)
    in_specs.append(spec_spec)
    args.append(x)

    kernel = functools.partial(
        _mask_fill_kernel,
        num_mask=num_mask,
        has_fill_ref=has_fill_ref,
        fill_const=(0.0 if fill_const is None else float(fill_const)),
        col_tiles_masked_axis=col_tiles_masked_axis)

    out = pl.pallas_call(
        kernel,
        out_shape=out_shape,
        grid_spec=pltpu.PrefetchScalarGridSpec(
            num_scalar_prefetch=0,
            grid=grid,
            in_specs=in_specs,
            out_specs=out_spec),
        compiler_params=pltpu.CompilerParams(
            dimension_semantics=("parallel", "parallel"),
            vmem_limit_bytes=_vmem_limit_bytes()),
    )(*args)

    if dim == 1:
        out = out.reshape(B, T, F)
    return out


# ---------------------------------------------------------------------------
# Glue: random sampling + reshape handling (mirrors mask_along_axis()).
# ---------------------------------------------------------------------------
def _sample_mask_params(key, B, D, mask_width_range, num_mask):
    k_len, k_pos = jax.random.split(key)
    mask_length = jax.random.randint(
        k_len, (B, num_mask), mask_width_range[0], mask_width_range[1], dtype=jnp.int32)
    max_pos = jnp.maximum(1, D - jnp.max(mask_length)).astype(jnp.int32)
    mask_pos = jax.random.randint(k_pos, (B, num_mask), 0, max_pos, dtype=jnp.int32)
    return mask_pos, mask_length


def mask_along_axis(key, spec, spec_lengths, mask_width_range=(0, 30), dim=1,
                    num_mask=2, replace_with_zero=True):
    org_shape = spec.shape
    if spec.ndim == 4:
        spec = spec.reshape(-1, spec.shape[2], spec.shape[3])
    B = spec.shape[0]
    D = spec.shape[dim]
    mask_pos, mask_length = _sample_mask_params(key, B, D, mask_width_range, num_mask)
    if replace_with_zero:
        out = _mask_fill_pallas(spec, mask_pos, mask_length, dim, num_mask,
                                fill_const=0.0)
    else:
        # TODO(synk): jnp.mean(spec) is an extra full-tensor HBM pass; hoist to the
        # caller / fuse into a Pallas reduction pass if the mean-fill mode is hot.
        fill = jnp.mean(spec).astype(jnp.float32).reshape((1,))
        out = _mask_fill_pallas(spec, mask_pos, mask_length, dim, num_mask,
                                fill_scalar=fill)
    out = out.reshape(org_shape)
    return out, spec_lengths


class MaskAlongAxisVariableMaxWidth:
    """JAX/Pallas port.  max_width = max_width_ratio * seq_len."""

    def __init__(self, mask_width_ratio_range: Union[float, Sequence[float]] = (0.0, 0.05),
                 num_mask: int = 2, dim: Union[int, str] = "time",
                 replace_with_zero: bool = True):
        if isinstance(mask_width_ratio_range, float):
            mask_width_ratio_range = (0.0, mask_width_ratio_range)
        if len(mask_width_ratio_range) != 2:
            raise TypeError(
                f"mask_width_ratio_range must be a tuple of float and float values: "
                f"{mask_width_ratio_range}")
        assert mask_width_ratio_range[1] > mask_width_ratio_range[0]
        if isinstance(dim, str):
            if dim == "time":
                dim = 1
            elif dim == "freq":
                dim = 2
            else:
                raise ValueError("dim must be int, 'time' or 'freq'")
        self.mask_width_ratio_range = mask_width_ratio_range
        self.num_mask = num_mask
        self.dim = dim
        self.replace_with_zero = replace_with_zero

    def __call__(self, key, spec, spec_lengths=None):
        max_seq_len = spec.shape[self.dim]
        min_mask_width = max(0, math.floor(max_seq_len * self.mask_width_ratio_range[0]))
        max_mask_width = min(max_seq_len,
                             math.floor(max_seq_len * self.mask_width_ratio_range[1]))
        if max_mask_width > min_mask_width:
            return mask_along_axis(
                key, spec, spec_lengths,
                mask_width_range=(min_mask_width, max_mask_width),
                dim=self.dim, num_mask=self.num_mask,
                replace_with_zero=self.replace_with_zero)
        return spec, spec_lengths


# ---------------------------------------------------------------------------
# Pure-JAX reference (for correctness checking of the kernel's masked fill).
# ---------------------------------------------------------------------------
def _reference_fill(spec, mask_pos, mask_length, dim, fill_value):
    D = spec.shape[dim]
    aran = jnp.arange(D)[None, None, :]
    mp = mask_pos[:, :, None]
    ml = mask_length[:, :, None]
    mask = (mp <= aran) & (aran < mp + ml)
    mask = jnp.any(mask, axis=1)
    mask = mask[:, :, None] if dim == 1 else mask[:, None, :]
    return jnp.where(mask, fill_value, spec)


if __name__ == "__main__":
    key = jax.random.PRNGKey(0)
    k_spec, k_mask, k_check, k_b13 = jax.random.split(key, 4)

    B, T, F = 2, 64, 80          # (Batch, Length, Freq); floor(64 * 0.05) = 3 > 0
    spec = jax.random.normal(k_spec, (B, T, F), dtype=jnp.float32)

    # 1) End-to-end module run (time masking, replace_with_zero=True).
    module = MaskAlongAxisVariableMaxWidth(mask_width_ratio_range=(0.0, 0.05),
                                           num_mask=2, dim="time",
                                           replace_with_zero=True)
    out, _ = module(k_mask, spec)
    out = jax.block_until_ready(out)
    assert out.shape == spec.shape and out.dtype == spec.dtype

    # 2) Kernel vs pure-JAX reference, time axis (lane-dense path), zero fill.
    mask_pos, mask_length = _sample_mask_params(k_check, B, T, (1, 4), 2)
    got = _mask_fill_pallas(spec, mask_pos, mask_length, dim=1, num_mask=2,
                            fill_const=0.0)
    want = _reference_fill(spec, mask_pos, mask_length, dim=1, fill_value=0.0)
    assert jnp.array_equal(jax.block_until_ready(got), want), "mismatch (time axis)"

    # 3) Freq axis with mean fill (SMEM scalar path).
    mask_pos_f, mask_length_f = _sample_mask_params(k_check, B, F, (1, 5), 2)
    mean = jnp.mean(spec)
    got_f = _mask_fill_pallas(spec, mask_pos_f, mask_length_f, dim=2, num_mask=2,
                              fill_scalar=mean.astype(jnp.float32).reshape((1,)))
    want_f = _reference_fill(spec, mask_pos_f, mask_length_f, dim=2, fill_value=mean)
    assert jnp.allclose(jax.block_until_ready(got_f), want_f), "mismatch (freq axis, mean)"

    # 4) Awkward (prime) batch size -> exercises the cdiv tail block path.
    B2 = 13
    spec2 = jax.random.normal(k_b13, (B2, T, F), dtype=jnp.float32)
    mp2, ml2 = _sample_mask_params(jax.random.PRNGKey(5), B2, T, (1, 5), 2)
    got2 = _mask_fill_pallas(spec2, mp2, ml2, dim=1, num_mask=2, fill_const=0.0)
    want2 = _reference_fill(spec2, mp2, ml2, dim=1, fill_value=0.0)
    assert jnp.array_equal(jax.block_until_ready(got2), want2), "mismatch (tail block)"

    # 5) 4-D input path (collapsed to 3-D inside mask_along_axis).
    spec4 = jax.random.normal(jax.random.PRNGKey(6), (2, 3, T, F), dtype=jnp.float32)
    k4 = jax.random.PRNGKey(7)
    out4, _ = mask_along_axis(k4, spec4, None, mask_width_range=(1, 5), dim=1,
                              num_mask=2, replace_with_zero=True)
    out4 = jax.block_until_ready(out4)
    sp3 = spec4.reshape(-1, T, F)
    mp4, ml4 = _sample_mask_params(k4, sp3.shape[0], T, (1, 5), 2)
    want4 = _reference_fill(sp3, mp4, ml4, dim=1, fill_value=0.0).reshape(spec4.shape)
    assert out4.shape == spec4.shape
    assert jnp.array_equal(out4, want4), "mismatch (4-D input)"

    print("KERNEL_OK")
</pallas_src>

<mosaic_0001>
module attributes {stable_mosaic.version = 11 : i64} {
  func.func @_mask_fill_kernel(%arg0: i32, %arg1: i32, %arg2: memref<2x2xi32, #tpu.memory_space<vmem>>, %arg3: memref<2x2xi32, #tpu.memory_space<vmem>>, %arg4: memref<2x5120xf32, #tpu.memory_space<vmem>>, %arg5: memref<2x5120xf32, #tpu.memory_space<vmem>>) attributes {dimension_semantics = [#tpu.dimension_semantics<parallel>, #tpu.dimension_semantics<parallel>], iteration_bounds = array<i64: 1, 1>, scalar_prefetch = 0 : i64, scratch_operands = 0 : i64, tpu.core_type = #tpu.core_type<tc>, window_params = [{transform_indices = @transform_0, window_bounds = array<i64: 2, 2>}, {transform_indices = @transform_1, window_bounds = array<i64: 2, 2>}, {transform_indices = @transform_2, window_bounds = array<i64: 2, 5120>}, {transform_indices = @transform_3, window_bounds = array<i64: 2, 5120>}]} {
    %c0 = arith.constant 0 : index
    %c0_0 = arith.constant 0 : index
    %0 = vector.load %arg4[%c0, %c0_0] : memref<2x5120xf32, #tpu.memory_space<vmem>>, vector<2x5120xf32>
    %1 = tpu.iota {dimensions = array<i32: 1>} : vector<1x5120xi32>
    %c5120_i32 = arith.constant 5120 : i32
    %2 = arith.muli %arg1, %c5120_i32 : i32
    %3 = vector.broadcast %2 : i32 to vector<1x5120xi32>
    %4 = arith.addi %1, %3 : vector<1x5120xi32>
    %c0_1 = arith.constant 0 : index
    %c0_2 = arith.constant 0 : index
    %5 = vector.load %arg2[%c0_1, %c0_2] : memref<2x2xi32, #tpu.memory_space<vmem>>, vector<2x2xi32>
    %c0_3 = arith.constant 0 : index
    %c0_4 = arith.constant 0 : index
    %6 = vector.load %arg3[%c0_3, %c0_4] : memref<2x2xi32, #tpu.memory_space<vmem>>, vector<2x2xi32>
    %7 = vector.extract_strided_slice %5 {offsets = [0, 0], sizes = [2, 1], strides = [1, 1]} : vector<2x2xi32> to vector<2x1xi32>
    %8 = vector.extract_strided_slice %6 {offsets = [0, 0], sizes = [2, 1], strides = [1, 1]} : vector<2x2xi32> to vector<2x1xi32>
    %9 = arith.addi %7, %8 : vector<2x1xi32>
    %10 = vector.broadcast %7 : vector<2x1xi32> to vector<2x5120xi32>
    %11 = vector.broadcast %4 : vector<1x5120xi32> to vector<2x5120xi32>
    %12 = arith.cmpi sle, %10, %11 : vector<2x5120xi32>
    %13 = vector.broadcast %4 : vector<1x5120xi32> to vector<2x5120xi32>
    %14 = vector.broadcast %9 : vector<2x1xi32> to vector<2x5120xi32>
    %15 = arith.cmpi slt, %13, %14 : vector<2x5120xi32>
    %16 = arith.andi %12, %15 : vector<2x5120xi1>
    %17 = vector.extract_strided_slice %5 {offsets = [0, 1], sizes = [2, 1], strides = [1, 1]} : vector<2x2xi32> to vector<2x1xi32>
    %18 = vector.extract_strided_slice %6 {offsets = [0, 1], sizes = [2, 1], strides = [1, 1]} : vector<2x2xi32> to vector<2x1xi32>
    %19 = arith.addi %17, %18 : vector<2x1xi32>
    %20 = vector.broadcast %17 : vector<2x1xi32> to vector<2x5120xi32>
    %21 = vector.broadcast %4 : vector<1x5120xi32> to vector<2x5120xi32>
    %22 = arith.cmpi sle, %20, %21 : vector<2x5120xi32>
    %23 = vector.broadcast %4 : vector<1x5120xi32> to vector<2x5120xi32>
    %24 = vector.broadcast %19 : vector<2x1xi32> to vector<2x5120xi32>
    %25 = arith.cmpi slt, %23, %24 : vector<2x5120xi32>
    %26 = arith.andi %22, %25 : vector<2x5120xi1>
    %27 = arith.ori %16, %26 : vector<2x5120xi1>
    %cst = arith.constant 0.000000e+00 : f32
    %28 = vector.broadcast %cst : f32 to vector<2x5120xf32>
    %29 = arith.select %27, %28, %0 : vector<2x5120xi1>, vector<2x5120xf32>
    %c0_5 = arith.constant 0 : index
    %c0_6 = arith.constant 0 : index
    %30 = vector.load %arg5[%c0_5, %c0_6] : memref<2x5120xf32, #tpu.memory_space<vmem>>, vector<2x5120xf32>
    tpu.vector_store %arg5[%c0_5, %c0_6], %29 {strides = array<i32>} : memref<2x5120xf32, #tpu.memory_space<vmem>>, vector<2x5120xf32>,
    return
  }
  func.func @transform_0(%arg0: i32, %arg1: i32) -> (i32, i32) {
    %c0_i32 = arith.constant 0 : i32
    %c0_i32_0 = arith.constant 0 : i32
    return %arg0, %c0_i32 : i32, i32
  }
  func.func @transform_1(%arg0: i32, %arg1: i32) -> (i32, i32) {
    %c0_i32 = arith.constant 0 : i32
    %c0_i32_0 = arith.constant 0 : i32
    return %arg0, %c0_i32 : i32, i32
  }
  func.func @transform_2(%arg0: i32, %arg1: i32) -> (i32, i32) {
    %c0_i32 = arith.constant 0 : i32
    return %arg0, %arg1 : i32, i32
  }
  func.func @transform_3(%arg0: i32, %arg1: i32) -> (i32, i32) {
    %c0_i32 = arith.constant 0 : i32
    return %arg0, %arg1 : i32, i32
  }
}

</mosaic_0001>

<llo_original>
// kernel: tpu_custom_call.1
$region0: #{tpu_custom_call.1}
  #allocation0 [shape = 'u32[]', space=smem, size = 0x4, offset = 0x4, fixed_abs, tag = 'smem constant byte address 0x4 - core index']
  #allocation1 [shape = 'u32[144,128]{1,0:T(1,128)}', space=vmem, size = 0x12000, scoped, tag = 'internal scratch']
  %s0 = inlined_call_operand.hbm [shape: s32[2,2], index: 0, kind: input, shape index: {}]
  %s1 = inlined_call_operand.vmem [shape: s32[2,2], index: 1, kind: input, shape index: {}]
  %s2 = inlined_call_operand.hbm [shape: f32[2,5120], index: 2, kind: input, shape index: {}]
  %s3 = inlined_call_operand.hbm [shape: f32[2,5120], index: 3, kind: output, shape index: {}]
  %s4 = sld [smem:[#allocation0]]
  $region30: #{tpu_custom_call.1} parent=0
    _
  %s6 = ssub.s32 1, %s4
  %s7 = scalar_select 0, %s6, %s4
  $region1: #{tpu_custom_call.1} parent=0
    #allocation2 [shape = 'u8[1024]{0}', space=vmem, size = 0x400, scoped, tag = 'input window, operand 0, single buffered']
    #allocation3 [shape = 's32[1]{0}', space=sflag, size = 0x4, scoped, tag = 'scoped memory for tpu_custom_call.1']
    #allocation4 [shape = 's32[1]{0}', space=sflag, size = 0x4, scoped, tag = 'scoped memory for tpu_custom_call.1']
    #allocation5 [shape = 'u8[40960]{0}', space=vmem, size = 0xa000, scoped, tag = 'input window, operand 2, single buffered']
    #allocation6 [shape = 's32[1]{0}', space=sflag, size = 0x4, scoped, tag = 'scoped memory for tpu_custom_call.1']
    #allocation7 [shape = 'u8[40960]{0}', space=vmem, size = 0xa000, scoped, tag = 'output window, operand 0, single buffered']
    %8 = vsyncpa [#allocation3], 0
    %9 = vsyncpa [#allocation6], 0
    %10 = vsyncpa [#allocation4], 0
    // Predicated region
    $region2: #{tpu_custom_call.1} parent=1 // pred_check
      _
    $region3: #{tpu_custom_call.1} parent=1 // pred_check_branch
      %12 = sbr.rel (0) target = $region5
    $region4: #{tpu_custom_call.1} parent=1 // pred_region
      %s14 = ssub.s32 32, 32
      %15 = vsyncadd [#allocation3], %s14
      %s17 = sshll.u32 [#allocation2], 4
      %s18 = int_to_ptr.vmem [resolvable:$true] %s17
      %20 = dma.hbm_to_vmem [thread:$0]  %s0, 32, %s18, [#allocation3]
    $region5: #{tpu_custom_call.1} parent=1 // pred_fallthru
      _
    // Predicated region
    $region6: #{tpu_custom_call.1} parent=1 // pred_check
      _
    $region7: #{tpu_custom_call.1} parent=1 // pred_check_branch
      %22 = sbr.rel (0) target = $region9
    $region8: #{tpu_custom_call.1} parent=1 // pred_region
      _
    $region9: #{tpu_custom_call.1} parent=1 // pred_fallthru
      _
    // Predicated region
    $region10: #{tpu_custom_call.1} parent=1 // pred_check
      _
    $region11: #{tpu_custom_call.1} parent=1 // pred_check_branch
      %24 = sbr.rel (0) target = $region13
    $region12: #{tpu_custom_call.1} parent=1 // pred_region
      %s26 = ssub.s32 1280, 1280
      %27 = vsyncadd [#allocation6], %s26
      %s29 = sshll.u32 [#allocation5], 4
      %s30 = int_to_ptr.vmem [resolvable:$true] %s29
      %32 = dma.hbm_to_vmem [thread:$0]  %s2, 1280, %s30, [#allocation6]
    $region13: #{tpu_custom_call.1} parent=1 // pred_fallthru
      _
    // Predicated region
    $region14: #{tpu_custom_call.1} parent=1 // pred_check
      _
    $region15: #{tpu_custom_call.1} parent=1 // pred_check_branch
      %34 = sbr.rel (0) target = $region17
    $region16: #{tpu_custom_call.1} parent=1 // pred_region
      %35 = dma.done [#allocation3], 32
    $region17: #{tpu_custom_call.1} parent=1 // pred_fallthru
      _
    // Predicated region
    $region18: #{tpu_custom_call.1} parent=1 // pred_check
      _
    $region19: #{tpu_custom_call.1} parent=1 // pred_check_branch
      %37 = sbr.rel (0) target = $region21
    $region20: #{tpu_custom_call.1} parent=1 // pred_region
      %38 = dma.done [#allocation6], 1280
    $region21: #{tpu_custom_call.1} parent=1 // pred_fallthru
      _
    %v39 = vld [vmem:[#allocation5] sm:$0xff]
    %v40 = vld [vmem:[#allocation5 + $0x8] sm:$0xff]
    %v41 = vld [vmem:[#allocation5 + $0x10] sm:$0xff]
    %v42 = vld [vmem:[#allocation5 + $0x18] sm:$0xff]
    %v43 = vld [vmem:[#allocation5 + $0x20] sm:$0xff]
    %v44 = vld [vmem:[#allocation5 + $0x28] sm:$0xff]
    %v45 = vld [vmem:[#allocation5 + $0x30] sm:$0xff]
    %v46 = vld [vmem:[#allocation5 + $0x38] sm:$0xff]
    %v47 = vld [vmem:[#allocation5 + $0x40] sm:$0xff]
    %v48 = vld [vmem:[#allocation5 + $0x48] sm:$0xff]
    %v49 = vlaneseq
    %v50 = vand.u32 %v49, 127
    %v51 = vadd.s32 %v50, 128
    %v52 = vadd.s32 %v50, 256
    %v53 = vadd.s32 %v50, 384
    %v54 = vadd.s32 %v50, 512
    %v55 = vadd.s32 %v50, 640
    %v56 = vadd.s32 %v50, 768
    %v57 = vadd.s32 %v50, 896
    %v58 = vadd.s32 %v50, 1024
    %v59 = vadd.s32 %v50, 1152
    %v60 = vadd.s32 %v50, 1280
    %v61 = vadd.s32 %v50, 1408
    %v62 = vadd.s32 %v50, 1536
    %v63 = vadd.s32 %v50, 1664
    %v64 = vadd.s32 %v50, 1792
    %v65 = vadd.s32 %v50, 1920
    %v66 = vadd.s32 %v50, 2048
    %v67 = vadd.s32 %v50, 2176
    %v68 = vadd.s32 %v50, 2304
    %v69 = vadd.s32 %v50, 2432
    %v70 = vadd.s32 %v50, 2560
    %v71 = vadd.s32 %v50, 2688
    %v72 = vadd.s32 %v50, 2816
    %v73 = vadd.s32 %v50, 2944
    %v74 = vadd.s32 %v50, 3072
    %v75 = vadd.s32 %v50, 3200
    %v76 = vadd.s32 %v50, 3328
    %v77 = vadd.s32 %v50, 3456
    %v78 = vadd.s32 %v50, 3584
    %v79 = vadd.s32 %v50, 3712
    %v80 = vadd.s32 %v50, 3840
    %v81 = vadd.s32 %v50, 3968
    %v82 = vadd.s32 %v50, 4096
    %v83 = vadd.s32 %v50, 4224
    %v84 = vadd.s32 %v50, 4352
    %v85 = vadd.s32 %v50, 4480
    %v86 = vadd.s32 %v50, 4608
    %v87 = vadd.s32 %v50, 4736
    %v88 = vadd.s32 %v50, 4864
    %v89 = vadd.s32 %v50, 4992
    %s90 = smul.u32 0, 5120
    %v91 = vstv %s90
    %v92 = vadd.s32 %v50, %v91
    %v93 = vadd.s32 %v51, %v91
    %v94 = vadd.s32 %v52, %v91
    %v95 = vadd.s32 %v53, %v91
    %v96 = vadd.s32 %v54, %v91
    %v97 = vadd.s32 %v55, %v91
    %v98 = vadd.s32 %v56, %v91
    %v99 = vadd.s32 %v57, %v91
    %v100 = vadd.s32 %v58, %v91
    %v101 = vadd.s32 %v59, %v91
    %v102 = vadd.s32 %v60, %v91
    %v103 = vadd.s32 %v61, %v91
    %v104 = vadd.s32 %v62, %v91
    %v105 = vadd.s32 %v63, %v91
    %v106 = vadd.s32 %v64, %v91
    %v107 = vadd.s32 %v65, %v91
    %v108 = vadd.s32 %v66, %v91
    %v109 = vadd.s32 %v67, %v91
    %v110 = vadd.s32 %v68, %v91
    %v111 = vadd.s32 %v69, %v91
    %v112 = vadd.s32 %v70, %v91
    %v113 = vadd.s32 %v71, %v91
    %v114 = vadd.s32 %v72, %v91
    %v115 = vadd.s32 %v73, %v91
    %v116 = vadd.s32 %v74, %v91
    %v117 = vadd.s32 %v75, %v91
    %v118 = vadd.s32 %v76, %v91
    %v119 = vadd.s32 %v77, %v91
    %v120 = vadd.s32 %v78, %v91
    %v121 = vadd.s32 %v79, %v91
    %v122 = vadd.s32 %v80, %v91
    %v123 = vadd.s32 %v81, %v91
    %v124 = vadd.s32 %v82, %v91
    %v125 = vadd.s32 %v83, %v91
    %v126 = vadd.s32 %v84, %v91
    %v127 = vadd.s32 %v85, %v91
    %v128 = vadd.s32 %v86, %v91
    %v129 = vadd.s32 %v87, %v91
    %v130 = vadd.s32 %v88, %v91
    %v131 = vadd.s32 %v89, %v91
    %v132 = vld [vmem:[#allocation2] sm:$0x3]
    %v133 = vld [vmem:[%s1] sm:$0x3]
    %v134 = vadd.s32 %v132, %v133
    %135 = vset.pattern.permute.xlu0 0
    %136 = vperm.xlu0 %135, %v132
    %v137 = vpop.permute.xlu0 %136
    %vm138 = vcmp.le.s32.totalorder %v137, %v92
    %vm139 = vcmp.le.s32.totalorder %v137, %v93
    %vm140 = vcmp.le.s32.totalorder %v137, %v94
    %vm141 = vcmp.le.s32.totalorder %v137, %v95
    %vm142 = vcmp.le.s32.totalorder %v137, %v96
    %vm143 = vcmp.le.s32.totalorder %v137, %v97
    %vm144 = vcmp.le.s32.totalorder %v137, %v98
    %vm145 = vcmp.le.s32.totalorder %v137, %v99
    %vm146 = vcmp.le.s32.totalorder %v137, %v100
    %vm147 = vcmp.le.s32.totalorder %v137, %v101
    %vm148 = vcmp.le.s32.totalorder %v137, %v102
    %vm149 = vcmp.le.s32.totalorder %v137, %v103
    %vm150 = vcmp.le.s32.totalorder %v137, %v104
    %vm151 = vcmp.le.s32.totalorder %v137, %v105
    %vm152 = vcmp.le.s32.totalorder %v137, %v106
    %vm153 = vcmp.le.s32.totalorder %v137, %v107
    %vm154 = vcmp.le.s32.totalorder %v137, %v108
    %vm155 = vcmp.le.s32.totalorder %v137, %v109
    %vm156 = vcmp.le.s32.totalorder %v137, %v110
    %vm157 = vcmp.le.s32.totalorder %v137, %v111
    %vm158 = vcmp.le.s32.totalorder %v137, %v112
    %vm159 = vcmp.le.s32.totalorder %v137, %v113
    %vm160 = vcmp.le.s32.totalorder %v137, %v114
    %vm161 = vcmp.le.s32.totalorder %v137, %v115
    %vm162 = vcmp.le.s32.totalorder %v137, %v116
    %vm163 = vcmp.le.s32.totalorder %v137, %v117
    %vm164 = vcmp.le.s32.totalorder %v137, %v118
    %vm165 = vcmp.le.s32.totalorder %v137, %v119
    %vm166 = vcmp.le.s32.totalorder %v137, %v120
    %vm167 = vcmp.le.s32.totalorder %v137, %v121
    %vm168 = vcmp.le.s32.totalorder %v137, %v122
    %vm169 = vcmp.le.s32.totalorder %v137, %v123
    %vm170 = vcmp.le.s32.totalorder %v137, %v124
    %vm171 = vcmp.le.s32.totalorder %v137, %v125
    %vm172 = vcmp.le.s32.totalorder %v137, %v126
    %vm173 = vcmp.le.s32.totalorder %v137, %v127
    %vm174 = vcmp.le.s32.totalorder %v137, %v128
    %vm175 = vcmp.le.s32.totalorder %v137, %v129
    %vm176 = vcmp.le.s32.totalorder %v137, %v130
    %vm177 = vcmp.le.s32.totalorder %v137, %v131
    %178 = vset.pattern.permute.xlu0 0
    %179 = vperm.xlu0 %178, %v134
    %v180 = vpop.permute.xlu0 %179
    %vm181 = vcmp.lt.s32.totalorder %v92, %v180
    %vm182 = vcmp.lt.s32.totalorder %v93, %v180
    %vm183 = vcmp.lt.s32.totalorder %v94, %v180
    %vm184 = vcmp.lt.s32.totalorder %v95, %v180
    %vm185 = vcmp.lt.s32.totalorder %v96, %v180
    %vm186 = vcmp.lt.s32.totalorder %v97, %v180
    %vm187 = vcmp.lt.s32.totalorder %v98, %v180
    %vm188 = vcmp.lt.s32.totalorder %v99, %v180
    %vm189 = vcmp.lt.s32.totalorder %v100, %v180
    %vm190 = vcmp.lt.s32.totalorder %v101, %v180
    %vm191 = vcmp.lt.s32.totalorder %v102, %v180
    %vm192 = vcmp.lt.s32.totalorder %v103, %v180
    %vm193 = vcmp.lt.s32.totalorder %v104, %v180
    %vm194 = vcmp.lt.s32.totalorder %v105, %v180
    %vm195 = vcmp.lt.s32.totalorder %v106, %v180
    %vm196 = vcmp.lt.s32.totalorder %v107, %v180
    %vm197 = vcmp.lt.s32.totalorder %v108, %v180
    %vm198 = vcmp.lt.s32.totalorder %v109, %v180
    %vm199 = vcmp.lt.s32.totalorder %v110, %v180
    %vm200 = vcmp.lt.s32.totalorder %v111, %v180
    %vm201 = vcmp.lt.s32.totalorder %v112, %v180
    %vm202 = vcmp.lt.s32.totalorder %v113, %v180
    %vm203 = vcmp.lt.s32.totalorder %v114, %v180
    %vm204 = vcmp.lt.s32.totalorder %v115, %v180
    %vm205 = vcmp.lt.s32.totalorder %v116, %v180
    %vm206 = vcmp.lt.s32.totalorder %v117, %v180
    %vm207 = vcmp.lt.s32.totalorder %v118, %v180
    %vm208 = vcmp.lt.s32.totalorder %v119, %v180
    %vm209 = vcmp.lt.s32.totalorder %v120, %v180
    %vm210 = vcmp.lt.s32.totalorder %v121, %v180
    %vm211 = vcmp.lt.s32.totalorder %v122, %v180
    %vm212 = vcmp.lt.s32.totalorder %v123, %v180
    %vm213 = vcmp.lt.s32.totalorder %v124, %v180
    %vm214 = vcmp.lt.s32.totalorder %v125, %v180
    %vm215 = vcmp.lt.s32.totalorder %v126, %v180
    %vm216 = vcmp.lt.s32.totalorder %v127, %v180
    %vm217 = vcmp.lt.s32.totalorder %v128, %v180
    %vm218 = vcmp.lt.s32.totalorder %v129, %v180
    %vm219 = vcmp.lt.s32.totalorder %v130, %v180
    %vm220 = vcmp.lt.s32.totalorder %v131, %v180
    %vm221 = vmand %vm138, %vm181
    %vm222 = vmand %vm139, %vm182
    %vm223 = vmand %vm140, %vm183
    %vm224 = vmand %vm141, %vm184
    %vm225 = vmand %vm142, %vm185
    %vm226 = vmand %vm143, %vm186
    %vm227 = vmand %vm144, %vm187
    %vm228 = vmand %vm145, %vm188
    %vm229 = vmand %vm146, %vm189
    %vm230 = vmand %vm147, %vm190
    %vm231 = vmand %vm148, %vm191
    %vm232 = vmand %vm149, %vm192
    %vm233 = vmand %vm150, %vm193
    %vm234 = vmand %vm151, %vm194
    %vm235 = vmand %vm152, %vm195
    %vm236 = vmand %vm153, %vm196
    %vm237 = vmand %vm154, %vm197
    %vm238 = vmand %vm155, %vm198
    %vm239 = vmand %vm156, %vm199
    %vm240 = vmand %vm157, %vm200
    %vm241 = vmand %vm158, %vm201
    %vm242 = vmand %vm159, %vm202
    %vm243 = vmand %vm160, %vm203
    %vm244 = vmand %vm161, %vm204
    %vm245 = vmand %vm162, %vm205
    %vm246 = vmand %vm163, %vm206
    %vm247 = vmand %vm164, %vm207
    %vm248 = vmand %vm165, %vm208
    %vm249 = vmand %vm166, %vm209
    %vm250 = vmand %vm167, %vm210
    %vm251 = vmand %vm168, %vm211
    %vm252 = vmand %vm169, %vm212
    %vm253 = vmand %vm170, %vm213
    %vm254 = vmand %vm171, %vm214
    %vm255 = vmand %vm172, %vm215
    %vm256 = vmand %vm173, %vm216
    %vm257 = vmand %vm174, %vm217
    %vm258 = vmand %vm175, %vm218
    %vm259 = vmand %vm176, %vm219
    %vm260 = vmand %vm177, %vm220
    %261 = vset.pattern.permute.xlu0 1
    %262 = vperm.xlu0 %261, %v132
    %v263 = vpop.permute.xlu0 %262
    %vm264 = vcmp.le.s32.totalorder %v263, %v92
    %vm265 = vcmp.le.s32.totalorder %v263, %v93
    %vm266 = vcmp.le.s32.totalorder %v263, %v94
    %vm267 = vcmp.le.s32.totalorder %v263, %v95
    %vm268 = vcmp.le.s32.totalorder %v263, %v96
    %vm269 = vcmp.le.s32.totalorder %v263, %v97
    %vm270 = vcmp.le.s32.totalorder %v263, %v98
    %vm271 = vcmp.le.s32.totalorder %v263, %v99
    %vm272 = vcmp.le.s32.totalorder %v263, %v100
    %vm273 = vcmp.le.s32.totalorder %v263, %v101
    %vm274 = vcmp.le.s32.totalorder %v263, %v102
    %vm275 = vcmp.le.s32.totalorder %v263, %v103
    %vm276 = vcmp.le.s32.totalorder %v263, %v104
    %vm277 = vcmp.le.s32.totalorder %v263, %v105
    %vm278 = vcmp.le.s32.totalorder %v263, %v106
    %vm279 = vcmp.le.s32.totalorder %v263, %v107
    %vm280 = vcmp.le.s32.totalorder %v263, %v108
    %vm281 = vcmp.le.s32.totalorder %v263, %v109
    %vm282 = vcmp.le.s32.totalorder %v263, %v110
    %vm283 = vcmp.le.s32.totalorder %v263, %v111
    %vm284 = vcmp.le.s32.totalorder %v263, %v112
    %vm285 = vcmp.le.s32.totalorder %v263, %v113
    %vm286 = vcmp.le.s32.totalorder %v263, %v114
    %vm287 = vcmp.le.s32.totalorder %v263, %v115
    %vm288 = vcmp.le.s32.totalorder %v263, %v116
    %vm289 = vcmp.le.s32.totalorder %v263, %v117
    %vm290 = vcmp.le.s32.totalorder %v263, %v118
    %vm291 = vcmp.le.s32.totalorder %v263, %v119
    %vm292 = vcmp.le.s32.totalorder %v263, %v120
    %vm293 = vcmp.le.s32.totalorder %v263, %v121
    %vm294 = vcmp.le.s32.totalorder %v263, %v122
    %vm295 = vcmp.le.s32.totalorder %v263, %v123
    %vm296 = vcmp.le.s32.totalorder %v263, %v124
    %vm297 = vcmp.le.s32.totalorder %v263, %v125
    %vm298 = vcmp.le.s32.totalorder %v263, %v126
    %vm299 = vcmp.le.s32.totalorder %v263, %v127
    %vm300 = vcmp.le.s32.totalorder %v263, %v128
    %vm301 = vcmp.le.s32.totalorder %v263, %v129
    %vm302 = vcmp.le.s32.totalorder %v263, %v130
    %vm303 = vcmp.le.s32.totalorder %v263, %v131
    %304 = vset.pattern.permute.xlu0 1
    %305 = vperm.xlu0 %304, %v134
    %v306 = vpop.permute.xlu0 %305
    %vm307 = vcmp.lt.s32.totalorder %v92, %v306
    %vm308 = vcmp.lt.s32.totalorder %v93, %v306
    %vm309 = vcmp.lt.s32.totalorder %v94, %v306
    %vm310 = vcmp.lt.s32.totalorder %v95, %v306
    %vm311 = vcmp.lt.s32.totalorder %v96, %v306
    %vm312 = vcmp.lt.s32.totalorder %v97, %v306
    %vm313 = vcmp.lt.s32.totalorder %v98, %v306
    %vm314 = vcmp.lt.s32.totalorder %v99, %v306
    %vm315 = vcmp.lt.s32.totalorder %v100, %v306
    %vm316 = vcmp.lt.s32.totalorder %v101, %v306
    %vm317 = vcmp.lt.s32.totalorder %v102, %v306
    %vm318 = vcmp.lt.s32.totalorder %v103, %v306
    %vm319 = vcmp.lt.s32.totalorder %v104, %v306
    %vm320 = vcmp.lt.s32.totalorder %v105, %v306
    %vm321 = vcmp.lt.s32.totalorder %v106, %v306
    %vm322 = vcmp.lt.s32.totalorder %v107, %v306
    %vm323 = vcmp.lt.s32.totalorder %v108, %v306
    %vm324 = vcmp.lt.s32.totalorder %v109, %v306
    %vm325 = vcmp.lt.s32.totalorder %v110, %v306
    %vm326 = vcmp.lt.s32.totalorder %v111, %v306
    %vm327 = vcmp.lt.s32.totalorder %v112, %v306
    %vm328 = vcmp.lt.s32.totalorder %v113, %v306
    %vm329 = vcmp.lt.s32.totalorder %v114, %v306
    %vm330 = vcmp.lt.s32.totalorder %v115, %v306
    %vm331 = vcmp.lt.s32.totalorder %v116, %v306
    %vm332 = vcmp.lt.s32.totalorder %v117, %v306
    %vm333 = vcmp.lt.s32.totalorder %v118, %v306
    %vm334 = vcmp.lt.s32.totalorder %v119, %v306
    %vm335 = vcmp.lt.s32.totalorder %v120, %v306
    %vm336 = vcmp.lt.s32.totalorder %v121, %v306
    %vm337 = vcmp.lt.s32.totalorder %v122, %v306
    %vm338 = vcmp.lt.s32.totalorder %v123, %v306
    %vm339 = vcmp.lt.s32.totalorder %v124, %v306
    %vm340 = vcmp.lt.s32.totalorder %v125, %v306
    %vm341 = vcmp.lt.s32.totalorder %v126, %v306
    %vm342 = vcmp.lt.s32.totalorder %v127, %v306
    %vm343 = vcmp.lt.s32.totalorder %v128, %v306
    %vm344 = vcmp.lt.s32.totalorder %v129, %v306
    %vm345 = vcmp.lt.s32.totalorder %v130, %v306
    %vm346 = vcmp.lt.s32.totalorder %v131, %v306
    %vm347 = vmand %vm264, %vm307
    %vm348 = vmand %vm265, %vm308
    %vm349 = vmand %vm266, %vm309
    %vm350 = vmand %vm267, %vm310
    %vm351 = vmand %vm268, %vm311
    %vm352 = vmand %vm269, %vm312
    %vm353 = vmand %vm270, %vm313
    %vm354 = vmand %vm271, %vm314
    %vm355 = vmand %vm272, %vm315
    %vm356 = vmand %vm273, %vm316
    %vm357 = vmand %vm274, %vm317
    %vm358 = vmand %vm275, %vm318
    %vm359 = vmand %vm276, %vm319
    %vm360 = vmand %vm277, %vm320
    %vm361 = vmand %vm278, %vm321
    %vm362 = vmand %vm279, %vm322
    %vm363 = vmand %vm280, %vm323
    %vm364 = vmand %vm281, %vm324
    %vm365 = vmand %vm282, %vm325
    %vm366 = vmand %vm283, %vm326
    %vm367 = vmand %vm284, %vm327
    %vm368 = vmand %vm285, %vm328
    %vm369 = vmand %vm286, %vm329
    %vm370 = vmand %vm287, %vm330
    %vm371 = vmand %vm288, %vm331
    %vm372 = vmand %vm289, %vm332
    %vm373 = vmand %vm290, %vm333
    %vm374 = vmand %vm291, %vm334
    %vm375 = vmand %vm292, %vm335
    %vm376 = vmand %vm293, %vm336
    %vm377 = vmand %vm294, %vm337
    %vm378 = vmand %vm295, %vm338
    %vm379 = vmand %vm296, %vm339
    %vm380 = vmand %vm297, %vm340
    %vm381 = vmand %vm298, %vm341
    %vm382 = vmand %vm299, %vm342
    %vm383 = vmand %vm300, %vm343
    %vm384 = vmand %vm301, %vm344
    %vm385 = vmand %vm302, %vm345
    %vm386 = vmand %vm303, %vm346
    %vm387 = vmor %vm221, %vm347
    %vm388 = vmor %vm222, %vm348
    %vm389 = vmor %vm223, %vm349
    %vm390 = vmor %vm224, %vm350
    %vm391 = vmor %vm225, %vm351
    %vm392 = vmor %vm226, %vm352
    %vm393 = vmor %vm227, %vm353
    %vm394 = vmor %vm228, %vm354
    %vm395 = vmor %vm229, %vm355
    %vm396 = vmor %vm230, %vm356
    %vm397 = vmor %vm231, %vm357
    %vm398 = vmor %vm232, %vm358
    %vm399 = vmor %vm233, %vm359
    %vm400 = vmor %vm234, %vm360
    %vm401 = vmor %vm235, %vm361
    %vm402 = vmor %vm236, %vm362
    %vm403 = vmor %vm237, %vm363
    %vm404 = vmor %vm238, %vm364
    %vm405 = vmor %vm239, %vm365
    %vm406 = vmor %vm240, %vm366
    %vm407 = vmor %vm241, %vm367
    %vm408 = vmor %vm242, %vm368
    %vm409 = vmor %vm243, %vm369
    %vm410 = vmor %vm244, %vm370
    %vm411 = vmor %vm245, %vm371
    %vm412 = vmor %vm246, %vm372
    %vm413 = vmor %vm247, %vm373
    %vm414 = vmor %vm248, %vm374
    %vm415 = vmor %vm249, %vm375
    %vm416 = vmor %vm250, %vm376
    %vm417 = vmor %vm251, %vm377
    %vm418 = vmor %vm252, %vm378
    %vm419 = vmor %vm253, %vm379
    %vm420 = vmor %vm254, %vm380
    %vm421 = vmor %vm255, %vm381
    %vm422 = vmor %vm256, %vm382
    %vm423 = vmor %vm257, %vm383
    %vm424 = vmor %vm258, %vm384
    %vm425 = vmor %vm259, %vm385
    %vm426 = vmor %vm260, %vm386
    %v437 = vcombine.high %v39, %v39
    %v439 = vunpack.c.l.s4 1983009808
    %v440 = vunpack.c.0.s8 %v439
    %v441 = vlaneseq
    %v442 = vshrl.u32 %v441, 7
    %v443 = vsub.s32 %v440, %v442
    %v444 = vrot.slane %v39, %v443
    %v446 = vunpack.c.l.s4 1983009808
    %v447 = vunpack.c.0.s8 %v446
    %v448 = vlaneseq
    %v449 = vshrl.u32 %v448, 7
    %v450 = vsub.s32 %v447, %v449
    %v451 = vrot.slane %v437, %v450
    %v452 = vcombine.high %v444, %v444
    %v453 = vcombine.high %v451, %v451
    %v454 = vcombine.high %v40, %v40
    %v456 = vunpack.c.l.s4 1983009808
    %v457 = vunpack.c.0.s8 %v456
    %v458 = vlaneseq
    %v459 = vshrl.u32 %v458, 7
    %v460 = vsub.s32 %v457, %v459
    %v461 = vrot.slane %v40, %v460
    %v463 = vunpack.c.l.s4 1983009808
    %v464 = vunpack.c.0.s8 %v463
    %v465 = vlaneseq
    %v466 = vshrl.u32 %v465, 7
    %v467 = vsub.s32 %v464, %v466
    %v468 = vrot.slane %v454, %v467
    %v469 = vcombine.high %v461, %v461
    %v470 = vcombine.high %v468, %v468
    %v471 = vcombine.high %v41, %v41
    %v473 = vunpack.c.l.s4 1983009808
    %v474 = vunpack.c.0.s8 %v473
    %v475 = vlaneseq
    %v476 = vshrl.u32 %v475, 7
    %v477 = vsub.s32 %v474, %v476
    %v478 = vrot.slane %v41, %v477
    %v480 = vunpack.c.l.s4 1983009808
    %v481 = vunpack.c.0.s8 %v480
    %v482 = vlaneseq
    %v483 = vshrl.u32 %v482, 7
    %v484 = vsub.s32 %v481, %v483
    %v485 = vrot.slane %v471, %v484
    %v486 = vcombine.high %v478, %v478
    %v487 = vcombine.high %v485, %v485
    %v488 = vcombine.high %v42, %v42
    %v490 = vunpack.c.l.s4 1983009808
    %v491 = vunpack.c.0.s8 %v490
    %v492 = vlaneseq
    %v493 = vshrl.u32 %v492, 7
    %v494 = vsub.s32 %v491, %v493
    %v495 = vrot.slane %v42, %v494
    %v497 = vunpack.c.l.s4 1983009808
    %v498 = vunpack.c.0.s8 %v497
    %v499 = vlaneseq
    %v500 = vshrl.u32 %v499, 7
    %v501 = vsub.s32 %v498, %v500
    %v502 = vrot.slane %v488, %v501
    %v503 = vcombine.high %v495, %v495
    %v504 = vcombine.high %v502, %v502
    %v505 = vcombine.high %v43, %v43
    %v507 = vunpack.c.l.s4 1983009808
    %v508 = vunpack.c.0.s8 %v507
    %v509 = vlaneseq
    %v510 = vshrl.u32 %v509, 7
    %v511 = vsub.s32 %v508, %v510
    %v512 = vrot.slane %v43, %v511
    %v514 = vunpack.c.l.s4 1983009808
    %v515 = vunpack.c.0.s8 %v514
    %v516 = vlaneseq
    %v517 = vshrl.u32 %v516, 7
    %v518 = vsub.s32 %v515, %v517
    %v519 = vrot.slane %v505, %v518
    %v520 = vcombine.high %v512, %v512
    %v521 = vcombine.high %v519, %v519
    %v522 = vcombine.high %v44, %v44
    %v524 = vunpack.c.l.s4 1983009808
    %v525 = vunpack.c.0.s8 %v524
    %v526 = vlaneseq
    %v527 = vshrl.u32 %v526, 7
    %v528 = vsub.s32 %v525, %v527
    %v529 = vrot.slane %v44, %v528
    %v531 = vunpack.c.l.s4 1983009808
    %v532 = vunpack.c.0.s8 %v531
    %v533 = vlaneseq
    %v534 = vshrl.u32 %v533, 7
    %v535 = vsub.s32 %v532, %v534
    %v536 = vrot.slane %v522, %v535
    %v537 = vcombine.high %v529, %v529
    %v538 = vcombine.high %v536, %v536
    %v539 = vcombine.high %v45, %v45
    %v541 = vunpack.c.l.s4 1983009808
    %v542 = vunpack.c.0.s8 %v541
    %v543 = vlaneseq
    %v544 = vshrl.u32 %v543, 7
    %v545 = vsub.s32 %v542, %v544
    %v546 = vrot.slane %v45, %v545
    %v548 = vunpack.c.l.s4 1983009808
    %v549 = vunpack.c.0.s8 %v548
    %v550 = vlaneseq
    %v551 = vshrl.u32 %v550, 7
    %v552 = vsub.s32 %v549, %v551
    %v553 = vrot.slane %v539, %v552
    %v554 = vcombine.high %v546, %v546
    %v555 = vcombine.high %v553, %v553
    %v556 = vcombine.high %v46, %v46
    %v558 = vunpack.c.l.s4 1983009808
    %v559 = vunpack.c.0.s8 %v558
    %v560 = vlaneseq
    %v561 = vshrl.u32 %v560, 7
    %v562 = vsub.s32 %v559, %v561
    %v563 = vrot.slane %v46, %v562
    %v565 = vunpack.c.l.s4 1983009808
    %v566 = vunpack.c.0.s8 %v565
    %v567 = vlaneseq
    %v568 = vshrl.u32 %v567, 7
    %v569 = vsub.s32 %v566, %v568
    %v570 = vrot.slane %v556, %v569
    %v571 = vcombine.high %v563, %v563
    %v572 = vcombine.high %v570, %v570
    %v573 = vcombine.high %v47, %v47
    %v575 = vunpack.c.l.s4 1983009808
    %v576 = vunpack.c.0.s8 %v575
    %v577 = vlaneseq
    %v578 = vshrl.u32 %v577, 7
    %v579 = vsub.s32 %v576, %v578
    %v580 = vrot.slane %v47, %v579
    %v582 = vunpack.c.l.s4 1983009808
    %v583 = vunpack.c.0.s8 %v582
    %v584 = vlaneseq
    %v585 = vshrl.u32 %v584, 7
    %v586 = vsub.s32 %v583, %v585
    %v587 = vrot.slane %v573, %v586
    %v588 = vcombine.high %v580, %v580
    %v589 = vcombine.high %v587, %v587
    %v590 = vcombine.high %v48, %v48
    %v592 = vunpack.c.l.s4 1983009808
    %v593 = vunpack.c.0.s8 %v592
    %v594 = vlaneseq
    %v595 = vshrl.u32 %v594, 7
    %v596 = vsub.s32 %v593, %v595
    %v597 = vrot.slane %v48, %v596
    %v599 = vunpack.c.l.s4 1983009808
    %v600 = vunpack.c.0.s8 %v599
    %v601 = vlaneseq
    %v602 = vshrl.u32 %v601, 7
    %v603 = vsub.s32 %v600, %v602
    %v604 = vrot.slane %v590, %v603
    %v605 = vcombine.high %v597, %v597
    %v606 = vcombine.high %v604, %v604
    %v647 = vsel %vm387, 0.0, %v444
    %v648 = vsel %vm388, 0.0, %v452
    %v649 = vsel %vm389, 0.0, %v451
    %v650 = vsel %vm390, 0.0, %v453
    %v651 = vsel %vm391, 0.0, %v461
    %v652 = vsel %vm392, 0.0, %v469
    %v653 = vsel %vm393, 0.0, %v468
    %v654 = vsel %vm394, 0.0, %v470
    %v655 = vsel %vm395, 0.0, %v478
    %v656 = vsel %vm396, 0.0, %v486
    %v657 = vsel %vm397, 0.0, %v485
    %v658 = vsel %vm398, 0.0, %v487
    %v659 = vsel %vm399, 0.0, %v495
    %v660 = vsel %vm400, 0.0, %v503
    %v661 = vsel %vm401, 0.0, %v502
    %v662 = vsel %vm402, 0.0, %v504
    %v663 = vsel %vm403, 0.0, %v512
    %v664 = vsel %vm404, 0.0, %v520
    %v665 = vsel %vm405, 0.0, %v519
    %v666 = vsel %vm406, 0.0, %v521
    %v667 = vsel %vm407, 0.0, %v529
    %v668 = vsel %vm408, 0.0, %v537
    %v669 = vsel %vm409, 0.0, %v536
    %v670 = vsel %vm410, 0.0, %v538
    %v671 = vsel %vm411, 0.0, %v546
    %v672 = vsel %vm412, 0.0, %v554
    %v673 = vsel %vm413, 0.0, %v553
    %v674 = vsel %vm414, 0.0, %v555
    %v675 = vsel %vm415, 0.0, %v563
    %v676 = vsel %vm416, 0.0, %v571
    %v677 = vsel %vm417, 0.0, %v570
    %v678 = vsel %vm418, 0.0, %v572
    %v679 = vsel %vm419, 0.0, %v580
    %v680 = vsel %vm420, 0.0, %v588
    %v681 = vsel %vm421, 0.0, %v587
    %v682 = vsel %vm422, 0.0, %v589
    %v683 = vsel %vm423, 0.0, %v597
    %v684 = vsel %vm424, 0.0, %v605
    %v685 = vsel %vm425, 0.0, %v604
    %v686 = vsel %vm426, 0.0, %v606
    %v727 = vcombine.low %v647, %v648
    %v728 = vcombine.low %v649, %v650
    %v730 = vunpack.c.l.s4 1983009808
    %v731 = vunpack.c.0.s8 %v730
    %v732 = vlaneseq
    %v733 = vshrl.u32 %v732, 7
    %v734 = vsub.s32 %v731, %v733
    %v735 = vrot.slane %v727, %v734
    %v737 = vunpack.c.l.s4 1983009808
    %v738 = vunpack.c.0.s8 %v737
    %v739 = vlaneseq
    %v740 = vshrl.u32 %v739, 7
    %v741 = vsub.s32 %v738, %v740
    %v742 = vrot.slane %v728, %v741
    %v743 = vcombine.low %v735, %v742
    %v744 = vcombine.low %v651, %v652
    %v745 = vcombine.low %v653, %v654
    %v747 = vunpack.c.l.s4 1983009808
    %v748 = vunpack.c.0.s8 %v747
    %v749 = vlaneseq
    %v750 = vshrl.u32 %v749, 7
    %v751 = vsub.s32 %v748, %v750
    %v752 = vrot.slane %v744, %v751
    %v754 = vunpack.c.l.s4 1983009808
    %v755 = vunpack.c.0.s8 %v754
    %v756 = vlaneseq
    %v757 = vshrl.u32 %v756, 7
    %v758 = vsub.s32 %v755, %v757
    %v759 = vrot.slane %v745, %v758
    %v760 = vcombine.low %v752, %v759
    %v761 = vcombine.low %v655, %v656
    %v762 = vcombine.low %v657, %v658
    %v764 = vunpack.c.l.s4 1983009808
    %v765 = vunpack.c.0.s8 %v764
    %v766 = vlaneseq
    %v767 = vshrl.u32 %v766, 7
    %v768 = vsub.s32 %v765, %v767
    %v769 = vrot.slane %v761, %v768
    %v771 = vunpack.c.l.s4 1983009808
    %v772 = vunpack.c.0.s8 %v771
    %v773 = vlaneseq
    %v774 = vshrl.u32 %v773, 7
    %v775 = vsub.s32 %v772, %v774
    %v776 = vrot.slane %v762, %v775
    %v777 = vcombine.low %v769, %v776
    %v778 = vcombine.low %v659, %v660
    %v779 = vcombine.low %v661, %v662
    %v781 = vunpack.c.l.s4 1983009808
    %v782 = vunpack.c.0.s8 %v781
    %v783 = vlaneseq
    %v784 = vshrl.u32 %v783, 7
    %v785 = vsub.s32 %v782, %v784
    %v786 = vrot.slane %v778, %v785
    %v788 = vunpack.c.l.s4 1983009808
    %v789 = vunpack.c.0.s8 %v788
    %v790 = vlaneseq
    %v791 = vshrl.u32 %v790, 7
    %v792 = vsub.s32 %v789, %v791
    %v793 = vrot.slane %v779, %v792
    %v794 = vcombine.low %v786, %v793
    %v795 = vcombine.low %v663, %v664
    %v796 = vcombine.low %v665, %v666
    %v798 = vunpack.c.l.s4 1983009808
    %v799 = vunpack.c.0.s8 %v798
    %v800 = vlaneseq
    %v801 = vshrl.u32 %v800, 7
    %v802 = vsub.s32 %v799, %v801
    %v803 = vrot.slane %v795, %v802
    %v805 = vunpack.c.l.s4 1983009808
    %v806 = vunpack.c.0.s8 %v805
    %v807 = vlaneseq
    %v808 = vshrl.u32 %v807, 7
    %v809 = vsub.s32 %v806, %v808
    %v810 = vrot.slane %v796, %v809
    %v811 = vcombine.low %v803, %v810
    %v812 = vcombine.low %v667, %v668
    %v813 = vcombine.low %v669, %v670
    %v815 = vunpack.c.l.s4 1983009808
    %v816 = vunpack.c.0.s8 %v815
    %v817 = vlaneseq
    %v818 = vshrl.u32 %v817, 7
    %v819 = vsub.s32 %v816, %v818
    %v820 = vrot.slane %v812, %v819
    %v822 = vunpack.c.l.s4 1983009808
    %v823 = vunpack.c.0.s8 %v822
    %v824 = vlaneseq
    %v825 = vshrl.u32 %v824, 7
    %v826 = vsub.s32 %v823, %v825
    %v827 = vrot.slane %v813, %v826
    %v828 = vcombine.low %v820, %v827
    %v829 = vcombine.low %v671, %v672
    %v830 = vcombine.low %v673, %v674
    %v832 = vunpack.c.l.s4 1983009808
    %v833 = vunpack.c.0.s8 %v832
    %v834 = vlaneseq
    %v835 = vshrl.u32 %v834, 7
    %v836 = vsub.s32 %v833, %v835
    %v837 = vrot.slane %v829, %v836
    %v839 = vunpack.c.l.s4 1983009808
    %v840 = vunpack.c.0.s8 %v839
    %v841 = vlaneseq
    %v842 = vshrl.u32 %v841, 7
    %v843 = vsub.s32 %v840, %v842
    %v844 = vrot.slane %v830, %v843
    %v845 = vcombine.low %v837, %v844
    %v846 = vcombine.low %v675, %v676
    %v847 = vcombine.low %v677, %v678
    %v849 = vunpack.c.l.s4 1983009808
    %v850 = vunpack.c.0.s8 %v849
    %v851 = vlaneseq
    %v852 = vshrl.u32 %v851, 7
    %v853 = vsub.s32 %v850, %v852
    %v854 = vrot.slane %v846, %v853
    %v856 = vunpack.c.l.s4 1983009808
    %v857 = vunpack.c.0.s8 %v856
    %v858 = vlaneseq
    %v859 = vshrl.u32 %v858, 7
    %v860 = vsub.s32 %v857, %v859
    %v861 = vrot.slane %v847, %v860
    %v862 = vcombine.low %v854, %v861
    %v863 = vcombine.low %v679, %v680
    %v864 = vcombine.low %v681, %v682
    %v866 = vunpack.c.l.s4 1983009808
    %v867 = vunpack.c.0.s8 %v866
    %v868 = vlaneseq
    %v869 = vshrl.u32 %v868, 7
    %v870 = vsub.s32 %v867, %v869
    %v871 = vrot.slane %v863, %v870
    %v873 = vunpack.c.l.s4 1983009808
    %v874 = vunpack.c.0.s8 %v873
    %v875 = vlaneseq
    %v876 = vshrl.u32 %v875, 7
    %v877 = vsub.s32 %v874, %v876
    %v878 = vrot.slane %v864, %v877
    %v879 = vcombine.low %v871, %v878
    %v880 = vcombine.low %v683, %v684
    %v881 = vcombine.low %v685, %v686
    %v883 = vunpack.c.l.s4 1983009808
    %v884 = vunpack.c.0.s8 %v883
    %v885 = vlaneseq
    %v886 = vshrl.u32 %v885, 7
    %v887 = vsub.s32 %v884, %v886
    %v888 = vrot.slane %v880, %v887
    %v890 = vunpack.c.l.s4 1983009808
    %v891 = vunpack.c.0.s8 %v890
    %v892 = vlaneseq
    %v893 = vshrl.u32 %v892, 7
    %v894 = vsub.s32 %v891, %v893
    %v895 = vrot.slane %v881, %v894
    %v896 = vcombine.low %v888, %v895
    %907 = vst [vmem:[#allocation7] sm:$0xff] %v743
    %908 = vst [vmem:[#allocation7 + $0x8] sm:$0xff] %v760
    %909 = vst [vmem:[#allocation7 + $0x10] sm:$0xff] %v777
    %910 = vst [vmem:[#allocation7 + $0x18] sm:$0xff] %v794
    %911 = vst [vmem:[#allocation7 + $0x20] sm:$0xff] %v811
    %912 = vst [vmem:[#allocation7 + $0x28] sm:$0xff] %v828
    %913 = vst [vmem:[#allocation7 + $0x30] sm:$0xff] %v845
    %914 = vst [vmem:[#allocation7 + $0x38] sm:$0xff] %v862
    %915 = vst [vmem:[#allocation7 + $0x40] sm:$0xff] %v879
    %916 = vst [vmem:[#allocation7 + $0x48] sm:$0xff] %v896
    // Predicated region
    $region22: #{tpu_custom_call.1} parent=1 // pred_check
      _
    $region23: #{tpu_custom_call.1} parent=1 // pred_check_branch
      %918 = sbr.rel (0) target = $region25
    $region24: #{tpu_custom_call.1} parent=1 // pred_region
      %s920 = ssub.s32 1280, 1280
      %921 = vsyncadd [#allocation4], %s920
      %s923 = sshll.u32 [#allocation7], 4
      %s924 = int_to_ptr.vmem [resolvable:$true] %s923
      %926 = dma.vmem_to_hbm [thread:$0]  %s924, 1280, %s3, [#allocation4]
    $region25: #{tpu_custom_call.1} parent=1 // pred_fallthru
      _
    // Predicated region
    $region26: #{tpu_custom_call.1} parent=1 // pred_check
      _
    $region27: #{tpu_custom_call.1} parent=1 // pred_check_branch
      %928 = sbr.rel (0) target = $region29
    $region28: #{tpu_custom_call.1} parent=1 // pred_region
      %929 = dma.done [#allocation4], 1280
    $region29: #{tpu_custom_call.1} parent=1 // pred_fallthru
      _
    %930 = vsyncpa [#allocation3], 1
    %931 = vsyncpa [#allocation6], 1
    %932 = vsyncpa [#allocation4], 1

</llo_original>
